<compile_context>
chip_gen: v7x
topology: tpu7x:2x2x1
jax: 0.10.0
libtpu: 0.0.40
codegen_flags: <defaults>
</compile_context>

<pallas_src>
import math
import jax
import jax.numpy as jnp
from jax.experimental import pallas as pl
from jax.experimental.pallas import tpu as pltpu


def _round_up(x, m):
    return ((x + m - 1) // m) * m


def _vmem_capacity_bytes():
    """Physical VMEM capacity; conservative 64 MiB fallback (v7x) if unknown."""
    try:
        info = pltpu.get_tpu_info()
        cap = getattr(info, "vmem_capacity_bytes", None)
        if cap:
            return int(cap)
    except Exception:
        pass
    return 64 << 20


def _vmem_needed(tm, tn, dim, cb, ob, needs_acc):
    """Estimate of VMEM bytes for one grid step (double-buffered pipelined refs)."""
    n = 2 * tm * dim * cb            # x tile
    n += 2 * (2 * dim * tn) * cb     # stacked [w1.T, w3.T] tile
    n += 2 * tn * dim * cb           # w2.T tile
    n += 2 * tm * dim * ob           # output tile
    if needs_acc:
        n += tm * dim * 4            # f32 accumulator scratch (single buffer)
    n += 3 * tm * tn * 4             # h1 / h3 / gated f32 intermediates (headroom)
    return n


def _select_tiles(m, dim, hidden, cb, ob, needs_acc, vmem_cap, tm_max=None, tn_max=None):
    """Largest token tile first (weight reuse), then largest hidden tile that fits."""
    row_mult = 16 if cb < 4 else 8
    m_r = _round_up(max(m, 1), row_mult)

    tm_cands = [t for t in (1024, 512, 256, 128) if t <= m_r]
    if m_r <= 1024:
        tm_cands.append(m_r)
    tm_cands = sorted(set(tm_cands), reverse=True) or [m_r]
    if tm_max is not None:
        tm_cands = [t for t in tm_cands if t <= tm_max] or [min(tm_cands)]

    tn_cands = [t for t in (1024, 512, 256, 128) if hidden % t == 0]
    if not tn_cands:
        tn_cands = [hidden]          # hidden not 128-aligned: single full-width pass
    tn_cands = sorted(set(tn_cands), reverse=True)
    if tn_max is not None:
        tn_cands = [t for t in tn_cands if t <= tn_max] or [min(tn_cands)]

    budget = max(vmem_cap - (6 << 20), vmem_cap // 2)
    for tm in tm_cands:
        for tn in tn_cands:
            need = _vmem_needed(tm, tn, dim, cb, ob, needs_acc)
            if need <= budget:
                return tm, tn, need
    tm, tn = tm_cands[-1], tn_cands[-1]
    return tm, tn, _vmem_needed(tm, tn, dim, cb, ob, needs_acc)


# ----------------------------- kernels ------------------------------------


def _ffn_kernel_acc(x_ref, w13_ref, w2t_ref, o_ref, acc_ref):
    # x_ref   : (tm, D)       token tile (compute dtype)
    # w13_ref : (2, D, tn)    stacked [w1.T, w3.T] slice (contraction-major)
    # w2t_ref : (tn, D)       w2.T slice (contraction-major)
    # o_ref   : (tm, D)       output tile (sub-f32 dtype)
    # acc_ref : (tm, D)       f32 accumulator, resident across the hidden axis
    j = pl.program_id(1)

    @pl.when(j == 0)
    def _():
        acc_ref[...] = jnp.zeros_like(acc_ref)

    x = x_ref[...]
    h1 = jnp.dot(x, w13_ref[0], preferred_element_type=jnp.float32)   # (tm, tn)
    h3 = jnp.dot(x, w13_ref[1], preferred_element_type=jnp.float32)   # (tm, tn)
    gated = (h1 * jax.nn.sigmoid(h1)) * h3                            # SiLU gate in f32
    acc_ref[...] += jnp.dot(gated.astype(w2t_ref.dtype), w2t_ref[...],
                            preferred_element_type=jnp.float32)

    @pl.when(j == pl.num_programs(1) - 1)
    def _():
        o_ref[...] = acc_ref[...].astype(o_ref.dtype)


def _ffn_kernel_inplace(x_ref, w13_ref, w2t_ref, o_ref):
    # float32 output: accumulate directly into the revisited output block,
    # saving tm*dim*4 bytes of VMEM scratch.
    j = pl.program_id(1)

    @pl.when(j == 0)
    def _():
        o_ref[...] = jnp.zeros_like(o_ref)

    x = x_ref[...]
    h1 = jnp.dot(x, w13_ref[0], preferred_element_type=jnp.float32)
    h3 = jnp.dot(x, w13_ref[1], preferred_element_type=jnp.float32)
    gated = (h1 * jax.nn.sigmoid(h1)) * h3
    o_ref[...] += jnp.dot(gated.astype(w2t_ref.dtype), w2t_ref[...],
                          preferred_element_type=jnp.float32)


# ----------------------------- wrapper ------------------------------------


def prepare_ffn_params(w1, w2, w3, dtype=jnp.bfloat16):
    """One-time conversion from the PyTorch nn.Linear layout to the kernel layout.

    w1, w3: (hidden, dim); w2: (dim, hidden).
    Returns (w13_t, w2_t) with w13_t: (2, dim, hidden) and w2_t: (hidden, dim),
    both in `dtype` -- store these persistently (do NOT reconvert per call).
    """
    hidden, dim = w1.shape
    assert w3.shape == (hidden, dim), "w3 must match w1 layout (hidden, dim)"
    assert w2.shape == (dim, hidden), "w2 must be (dim, hidden)"
    w13_t = jnp.stack([w1.T, w3.T], axis=0).astype(dtype)
    w2_t = jnp.transpose(w2).astype(dtype)
    return w13_t, w2_t


def feed_forward(x, w13_t, w2_t, *, tm=None, tn=None):
    """SwiGLU FFN: w2( silu(w1 x) * (w3 x) ).

    x     : (..., dim), any float dtype (output keeps this dtype).
    w13_t : (2, dim, hidden) pre-transposed stacked gate/up weights (compute dtype).
    w2_t  : (hidden, dim)    pre-transposed down weights (same dtype).
    tm/tn : optional upper bounds on the auto-selected token / hidden tile sizes.
    """
    orig_shape = x.shape
    orig_dtype = x.dtype
    dim = orig_shape[-1]
    assert w13_t.ndim == 3 and w13_t.shape[0] == 2 and w13_t.shape[1] == dim, \
        "w13_t must be (2, dim, hidden) -- use prepare_ffn_params()"
    hidden = w13_t.shape[2]
    assert w2_t.shape == (hidden, dim), "w2_t must be (hidden, dim)"

    compute_dtype = w13_t.dtype
    cb = jnp.dtype(compute_dtype).itemsize
    ob = jnp.dtype(orig_dtype).itemsize

    x2d = x.reshape(-1, dim).astype(compute_dtype)   # activation-only cast
    m = x2d.shape[0]

    needs_acc = orig_dtype != jnp.float32
    vmem_cap = _vmem_capacity_bytes()
    tm_eff, tn_eff, needed = _select_tiles(m, dim, hidden, cb, ob, needs_acc,
                                           vmem_cap, tm_max=tm, tn_max=tn)
    if needed > vmem_cap:
        raise ValueError(
            f"FFN tiles need ~{needed >> 20} MiB VMEM but only "
            f"{vmem_cap >> 20} MiB available (dim={dim}, hidden={hidden}).")
    vmem_limit = int(min(vmem_cap, max(needed + (8 << 20), 32 << 20)))

    n_token_tiles = pl.cdiv(m, tm_eff)
    n_hidden_tiles = hidden // tn_eff

    kernel = _ffn_kernel_acc if needs_acc else _ffn_kernel_inplace
    scratch = [pltpu.VMEM((tm_eff, dim), jnp.float32)] if needs_acc else []

    cost = pl.CostEstimate(
        flops=6 * m * dim * hidden,
        transcendentals=m * hidden,
        bytes_accessed=int(m * dim * (cb + ob)
                           + n_token_tiles * 3 * dim * hidden * cb),
    )

    out = pl.pallas_call(
        kernel,
        out_shape=jax.ShapeDtypeStruct((m, dim), orig_dtype),
        grid_spec=pltpu.PrefetchScalarGridSpec(
            num_scalar_prefetch=0,
            grid=(n_token_tiles, n_hidden_tiles),     # reduction (hidden) axis last
            in_specs=[
                pl.BlockSpec((tm_eff, dim), lambda i, j: (i, 0)),       # x tile
                pl.BlockSpec((2, dim, tn_eff), lambda i, j: (0, 0, j)),  # [w1.T,w3.T]
                pl.BlockSpec((tn_eff, dim), lambda i, j: (j, 0)),       # w2.T slice
            ],
            out_specs=pl.BlockSpec((tm_eff, dim), lambda i, j: (i, 0)),
            scratch_shapes=scratch,
        ),
        compiler_params=pltpu.CompilerParams(
            dimension_semantics=("parallel", "arbitrary"),
            vmem_limit_bytes=vmem_limit),
        cost_estimate=cost,
    )(x2d, w13_t, w2_t)

    return out.reshape(orig_shape)


# --------------------------- init / reference -----------------------------


def _round_hidden(hidden_dim, multiple_of=256):
    return multiple_of * ((hidden_dim + multiple_of - 1) // multiple_of)


def init_params(key, dim, hidden_dim, multiple_of=256, dtype=jnp.float32):
    """Deterministic init mimicking nn.Linear's U(-1/sqrt(fan_in), 1/sqrt(fan_in))."""
    hidden = _round_hidden(hidden_dim, multiple_of)
    k1, k2, k3 = jax.random.split(key, 3)
    b_in = 1.0 / math.sqrt(dim)
    b_hid = 1.0 / math.sqrt(hidden)
    w1 = jax.random.uniform(k1, (hidden, dim), dtype, minval=-b_in, maxval=b_in)
    w3 = jax.random.uniform(k3, (hidden, dim), dtype, minval=-b_in, maxval=b_in)
    w2 = jax.random.uniform(k2, (dim, hidden), dtype, minval=-b_hid, maxval=b_hid)
    return w1, w2, w3


def _reference(x, w1, w2, w3):
    h1 = x @ w1.T
    h3 = x @ w3.T
    return (jax.nn.silu(h1) * h3) @ w2.T


if __name__ == "__main__":
    key = jax.random.PRNGKey(0)
    kx, kp = jax.random.split(key)

    batch, seq, dim = 2, 8, 128          # tokens = 16
    hidden_dim = 200                     # rounds up to 256 (multiple_of=256)

    x = jax.random.normal(kx, (batch, seq, dim), jnp.float32)
    w1, w2, w3 = init_params(kp, dim, hidden_dim)

    ref = _reference(x.reshape(-1, dim), w1, w2, w3).reshape(x.shape)

    # Full-precision weights (exact path): tight tolerance.
    w13_f32, w2t_f32 = prepare_ffn_params(w1, w2, w3, dtype=jnp.float32)
    out_f32 = jax.block_until_ready(feed_forward(x, w13_f32, w2t_f32))
    assert out_f32.shape == x.shape
    assert jnp.allclose(out_f32, ref, atol=5e-3, rtol=5e-3), "f32 path mismatch"

    # Persistent bf16 weights (production path, f32 accumulation): loose tolerance.
    w13_bf16, w2t_bf16 = prepare_ffn_params(w1, w2, w3, dtype=jnp.bfloat16)
    out_bf16 = jax.block_until_ready(feed_forward(x, w13_bf16, w2t_bf16))
    assert out_bf16.shape == x.shape
    assert jnp.allclose(out_bf16, ref, atol=8e-2, rtol=8e-2), "bf16 path mismatch"

    # Ragged token count: exercises the masked partial token tile (no pad/slice).
    xr = jax.random.normal(kx, (1, 5, dim), jnp.float32)
    ref_r = _reference(xr.reshape(-1, dim), w1, w2, w3).reshape(xr.shape)
    out_r = jax.block_until_ready(feed_forward(xr, w13_f32, w2t_f32))
    assert jnp.allclose(out_r, ref_r, atol=5e-3, rtol=5e-3), "ragged path mismatch"

    print("KERNEL_OK")
</pallas_src>

<mosaic_0001>
module attributes {stable_mosaic.version = 11 : i64} {
  func.func @_ffn_kernel_inplace(%arg0: i32, %arg1: i32, %arg2: memref<16x128xf32, #tpu.memory_space<vmem>>, %arg3: memref<2x128x256xf32, #tpu.memory_space<vmem>>, %arg4: memref<256x128xf32, #tpu.memory_space<vmem>>, %arg5: memref<16x128xf32, #tpu.memory_space<vmem>>) attributes {dimension_semantics = [#tpu.dimension_semantics<parallel>, #tpu.dimension_semantics<arbitrary>], iteration_bounds = array<i64: 1, 1>, scalar_prefetch = 0 : i64, scratch_operands = 0 : i64, tpu.core_type = #tpu.core_type<tc>, window_params = [{transform_indices = @transform_0, window_bounds = array<i64: 16, 128>}, {transform_indices = @transform_1, window_bounds = array<i64: 2, 128, 256>}, {transform_indices = @transform_2, window_bounds = array<i64: 256, 128>}, {transform_indices = @transform_3, window_bounds = array<i64: 16, 128>}]} {
    %c0_i32 = arith.constant 0 : i32
    %0 = arith.cmpi eq, %arg1, %c0_i32 : i32
    %1 = arith.extui %0 : i1 to i32
    %c0_i32_0 = arith.constant 0 : i32
    %2 = arith.cmpi ne, %1, %c0_i32_0 : i32
    scf.if %2 {
      %cst_16 = arith.constant 0.000000e+00 : f32
      %22 = vector.broadcast %cst_16 : f32 to vector<16x128xf32>
      %c0_17 = arith.constant 0 : index
      %c0_18 = arith.constant 0 : index
      %23 = vector.load %arg5[%c0_17, %c0_18] : memref<16x128xf32, #tpu.memory_space<vmem>>, vector<16x128xf32>
      tpu.vector_store %arg5[%c0_17, %c0_18], %22 {strides = array<i32>} : memref<16x128xf32, #tpu.memory_space<vmem>>, vector<16x128xf32>,
    } else {
    }
    %c0 = arith.constant 0 : index
    %c0_1 = arith.constant 0 : index
    %3 = vector.load %arg2[%c0, %c0_1] : memref<16x128xf32, #tpu.memory_space<vmem>>, vector<16x128xf32>
    %c0_2 = arith.constant 0 : index
    %c0_3 = arith.constant 0 : index
    %c0_4 = arith.constant 0 : index
    %4 = vector.load %arg3[%c0_2, %c0_3, %c0_4] : memref<2x128x256xf32, #tpu.memory_space<vmem>>, vector<1x128x256xf32>
    %5 = vector.shape_cast %4 : vector<1x128x256xf32> to vector<128x256xf32>
    %cst = arith.constant dense<0.000000e+00> : vector<16x256xf32>
    %6 = tpu.matmul %3, %5, %cst {dimension_numbers = #tpu.dot_dimension_numbers<[1], [0], [0], [1], [0, 0, 1, 1], [], []>} : vector<16x128xf32>, vector<128x256xf32>, vector<16x256xf32> -> vector<16x256xf32>
    %c1 = arith.constant 1 : index
    %c0_5 = arith.constant 0 : index
    %c0_6 = arith.constant 0 : index
    %7 = vector.load %arg3[%c1, %c0_5, %c0_6] : memref<2x128x256xf32, #tpu.memory_space<vmem>>, vector<1x128x256xf32>
    %8 = vector.shape_cast %7 : vector<1x128x256xf32> to vector<128x256xf32>
    %cst_7 = arith.constant dense<0.000000e+00> : vector<16x256xf32>
    %9 = tpu.matmul %3, %8, %cst_7 {dimension_numbers = #tpu.dot_dimension_numbers<[1], [0], [0], [1], [0, 0, 1, 1], [], []>} : vector<16x128xf32>, vector<128x256xf32>, vector<16x256xf32> -> vector<16x256xf32>
    %10 = arith.negf %6 : vector<16x256xf32>
    %11 = math.exp %10 : vector<16x256xf32>
    %cst_8 = arith.constant 1.000000e+00 : f32
    %12 = vector.broadcast %cst_8 : f32 to vector<16x256xf32>
    %13 = arith.addf %12, %11 : vector<16x256xf32>
    %14 = arith.divf %12, %13 : vector<16x256xf32>
    %15 = arith.mulf %6, %14 : vector<16x256xf32>
    %16 = arith.mulf %15, %9 : vector<16x256xf32>
    %c0_9 = arith.constant 0 : index
    %c0_10 = arith.constant 0 : index
    %17 = vector.load %arg5[%c0_9, %c0_10] : memref<16x128xf32, #tpu.memory_space<vmem>>, vector<16x128xf32>
    %c0_11 = arith.constant 0 : index
    %c0_12 = arith.constant 0 : index
    %18 = vector.load %arg4[%c0_11, %c0_12] : memref<256x128xf32, #tpu.memory_space<vmem>>, vector<256x128xf32>
    %cst_13 = arith.constant dense<0.000000e+00> : vector<16x128xf32>
    %19 = tpu.matmul %16, %18, %cst_13 {dimension_numbers = #tpu.dot_dimension_numbers<[1], [0], [0], [1], [0, 0, 1, 1], [], []>} : vector<16x256xf32>, vector<256x128xf32>, vector<16x128xf32> -> vector<16x128xf32>
    %20 = arith.addf %17, %19 : vector<16x128xf32>
    %c0_14 = arith.constant 0 : index
    %c0_15 = arith.constant 0 : index
    %21 = vector.load %arg5[%c0_14, %c0_15] : memref<16x128xf32, #tpu.memory_space<vmem>>, vector<16x128xf32>
    tpu.vector_store %arg5[%c0_14, %c0_15], %20 {strides = array<i32>} : memref<16x128xf32, #tpu.memory_space<vmem>>, vector<16x128xf32>,
    return
  }
  func.func @transform_0(%arg0: i32, %arg1: i32) -> (i32, i32) {
    %c0_i32 = arith.constant 0 : i32
    %c0_i32_0 = arith.constant 0 : i32
    return %arg0, %c0_i32 : i32, i32
  }
  func.func @transform_1(%arg0: i32, %arg1: i32) -> (i32, i32, i32) {
    %c0_i32 = arith.constant 0 : i32
    %c0_i32_0 = arith.constant 0 : i32
    %c0_i32_1 = arith.constant 0 : i32
    return %c0_i32, %c0_i32_0, %arg1 : i32, i32, i32
  }
  func.func @transform_2(%arg0: i32, %arg1: i32) -> (i32, i32) {
    %c0_i32 = arith.constant 0 : i32
    %c0_i32_0 = arith.constant 0 : i32
    return %arg1, %c0_i32 : i32, i32
  }
  func.func @transform_3(%arg0: i32, %arg1: i32) -> (i32, i32) {
    %c0_i32 = arith.constant 0 : i32
    %c0_i32_0 = arith.constant 0 : i32
    return %arg0, %c0_i32 : i32, i32
  }
}

</mosaic_0001>

<llo_original>
// kernel: tpu_custom_call.1
$region0: #{tpu_custom_call.1}
  #allocation0 [shape = 'u32[]', space=smem, size = 0x4, offset = 0x4, fixed_abs, tag = 'smem constant byte address 0x4 - core index']
  #allocation1 [shape = 'u32[144,128]{1,0:T(1,128)}', space=vmem, size = 0x12000, scoped, tag = 'internal scratch']
  %s0 = inlined_call_operand.hbm [shape: f32[16,128], index: 0, kind: input, shape index: {}]
  %s1 = inlined_call_operand.hbm [shape: f32[2,128,256], index: 1, kind: input, shape index: {}]
  %s2 = inlined_call_operand.hbm [shape: f32[256,128], index: 2, kind: input, shape index: {}]
  %s3 = inlined_call_operand.hbm [shape: f32[16,128], index: 3, kind: output, shape index: {}]
  %s4 = sld [smem:[#allocation0]]
  $region38: #{tpu_custom_call.1} parent=0
    _
  %s6 = ssub.s32 1, %s4
  %s7 = scalar_select 0, %s6, %s4
  $region1: #{tpu_custom_call.1} parent=0
    #allocation2 [shape = 'u8[8192]{0}', space=vmem, size = 0x2000, scoped, tag = 'input window, operand 0, single buffered']
    #allocation3 [shape = 's32[1]{0}', space=sflag, size = 0x4, scoped, tag = 'scoped memory for tpu_custom_call.1']
    #allocation4 [shape = 's32[1]{0}', space=sflag, size = 0x4, scoped, tag = 'scoped memory for tpu_custom_call.1']
    #allocation5 [shape = 'u8[262144]{0}', space=vmem, size = 0x40000, scoped, tag = 'input window, operand 1, single buffered']
    #allocation6 [shape = 's32[1]{0}', space=sflag, size = 0x4, scoped, tag = 'scoped memory for tpu_custom_call.1']
    #allocation7 [shape = 'u8[131072]{0}', space=vmem, size = 0x20000, scoped, tag = 'input window, operand 2, single buffered']
    #allocation8 [shape = 'u8[8192]{0}', space=vmem, size = 0x2000, scoped, tag = 'output window, operand 0, single buffered']
    %8 = vsyncpa [#allocation3], 0
    %9 = vsyncpa [#allocation6], 0
    %10 = vsyncpa [#allocation4], 0
    // Predicated region
    $region2: #{tpu_custom_call.1} parent=1 // pred_check
      _
    $region3: #{tpu_custom_call.1} parent=1 // pred_check_branch
      %12 = sbr.rel (0) target = $region5
    $region4: #{tpu_custom_call.1} parent=1 // pred_region
      %s14 = ssub.s32 256, 256
      %15 = vsyncadd [#allocation3], %s14
      %s16 = sshll.u32 [#allocation2], 4
      %s17 = int_to_ptr.vmem [resolvable:$true] %s16
      %22 = dma.hbm_to_vmem [thread:$0]  %s0, 256, %s17, [#allocation3], 128, 128, 8
    $region5: #{tpu_custom_call.1} parent=1 // pred_fallthru
      _
    // Predicated region
    $region6: #{tpu_custom_call.1} parent=1 // pred_check
      _
    $region7: #{tpu_custom_call.1} parent=1 // pred_check_branch
      %24 = sbr.rel (0) target = $region9
    $region8: #{tpu_custom_call.1} parent=1 // pred_region
      %s26 = ssub.s32 8192, 8192
      %27 = vsyncadd [#allocation6], %s26
      %s28 = sshll.u32 [#allocation5], 4
      %s29 = int_to_ptr.vmem [resolvable:$true] %s28
      %34 = dma.hbm_to_vmem [thread:$0]  %s1, 8192, %s29, [#allocation6], 256, 256, 16
    $region9: #{tpu_custom_call.1} parent=1 // pred_fallthru
      _
    // Predicated region
    $region10: #{tpu_custom_call.1} parent=1 // pred_check
      _
    $region11: #{tpu_custom_call.1} parent=1 // pred_check_branch
      %36 = sbr.rel (0) target = $region13
    $region12: #{tpu_custom_call.1} parent=1 // pred_region
      %s38 = ssub.s32 4096, 4096
      %39 = vsyncadd [#allocation6], %s38
      %s40 = sshll.u32 [#allocation7], 4
      %s41 = int_to_ptr.vmem [resolvable:$true] %s40
      %46 = dma.hbm_to_vmem [thread:$0]  %s2, 4096, %s41, [#allocation6], 128, 128, 8
    $region13: #{tpu_custom_call.1} parent=1 // pred_fallthru
      _
    // Predicated region
    $region14: #{tpu_custom_call.1} parent=1 // pred_check
      _
    $region15: #{tpu_custom_call.1} parent=1 // pred_check_branch
      %48 = sbr.rel (0) target = $region17
    $region16: #{tpu_custom_call.1} parent=1 // pred_region
      %49 = dma.done [#allocation3], 256
    $region17: #{tpu_custom_call.1} parent=1 // pred_fallthru
      _
    // Predicated region
    $region18: #{tpu_custom_call.1} parent=1 // pred_check
      _
    $region19: #{tpu_custom_call.1} parent=1 // pred_check_branch
      %51 = sbr.rel (0) target = $region21
    $region20: #{tpu_custom_call.1} parent=1 // pred_region
      %52 = dma.done [#allocation6], 8192
    $region21: #{tpu_custom_call.1} parent=1 // pred_fallthru
      _
    // Predicated region
    $region22: #{tpu_custom_call.1} parent=1 // pred_check
      _
    $region23: #{tpu_custom_call.1} parent=1 // pred_check_branch
      %54 = sbr.rel (0) target = $region25
    $region24: #{tpu_custom_call.1} parent=1 // pred_region
      %55 = dma.done [#allocation6], 4096
    $region25: #{tpu_custom_call.1} parent=1 // pred_fallthru
      _
    %p56 = scmp.eq.s32.totalorder 0, 0
    // Predicated region
    $region26: #{tpu_custom_call.1} parent=1 // pred_check
      %p57 = pneg %p56
    $region27: #{tpu_custom_call.1} parent=1 // pred_check_branch
      %59 = sbr.rel (%p57) target = $region29
    $region28: #{tpu_custom_call.1} parent=1 // pred_region
      %60 = vst [vmem:[#allocation8] sm:$0xff] 0.0
      %61 = vst [vmem:[#allocation8 + $0x8] sm:$0xff] 0.0
    $region29: #{tpu_custom_call.1} parent=1 // pred_fallthru
      _
    %v62 = vld [vmem:[#allocation2] sm:$0xff]
    %v63 = vld [vmem:[#allocation2 + $0x8] sm:$0xff]
    %v64 = vld [vmem:[#allocation5] sm:$0xff]
    %v65 = vld [vmem:[#allocation5 + $0x8] sm:$0xff]
    %v66 = vld [vmem:[#allocation5 + $0x10] sm:$0xff]
    %v67 = vld [vmem:[#allocation5 + $0x18] sm:$0xff]
    %v68 = vld [vmem:[#allocation5 + $0x20] sm:$0xff]
    %v69 = vld [vmem:[#allocation5 + $0x28] sm:$0xff]
    %v70 = vld [vmem:[#allocation5 + $0x30] sm:$0xff]
    %v71 = vld [vmem:[#allocation5 + $0x38] sm:$0xff]
    %v72 = vld [vmem:[#allocation5 + $0x40] sm:$0xff]
    %v73 = vld [vmem:[#allocation5 + $0x48] sm:$0xff]
    %v74 = vld [vmem:[#allocation5 + $0x50] sm:$0xff]
    %v75 = vld [vmem:[#allocation5 + $0x58] sm:$0xff]
    %v76 = vld [vmem:[#allocation5 + $0x60] sm:$0xff]
    %v77 = vld [vmem:[#allocation5 + $0x68] sm:$0xff]
    %v78 = vld [vmem:[#allocation5 + $0x70] sm:$0xff]
    %v79 = vld [vmem:[#allocation5 + $0x78] sm:$0xff]
    %v80 = vld [vmem:[#allocation5 + $0x80] sm:$0xff]
    %v81 = vld [vmem:[#allocation5 + $0x88] sm:$0xff]
    %v82 = vld [vmem:[#allocation5 + $0x90] sm:$0xff]
    %v83 = vld [vmem:[#allocation5 + $0x98] sm:$0xff]
    %v84 = vld [vmem:[#allocation5 + $0xa0] sm:$0xff]
    %v85 = vld [vmem:[#allocation5 + $0xa8] sm:$0xff]
    %v86 = vld [vmem:[#allocation5 + $0xb0] sm:$0xff]
    %v87 = vld [vmem:[#allocation5 + $0xb8] sm:$0xff]
    %v88 = vld [vmem:[#allocation5 + $0xc0] sm:$0xff]
    %v89 = vld [vmem:[#allocation5 + $0xc8] sm:$0xff]
    %v90 = vld [vmem:[#allocation5 + $0xd0] sm:$0xff]
    %v91 = vld [vmem:[#allocation5 + $0xd8] sm:$0xff]
    %v92 = vld [vmem:[#allocation5 + $0xe0] sm:$0xff]
    %v93 = vld [vmem:[#allocation5 + $0xe8] sm:$0xff]
    %v94 = vld [vmem:[#allocation5 + $0xf0] sm:$0xff]
    %v95 = vld [vmem:[#allocation5 + $0xf8] sm:$0xff]
    %96 = vmatprep.subr.mxu0 %v65
    %97 = vmatpush1.msra.mxu0 %v64
    %98 = vmatprep.subr.mxu0 %v67
    %99 = vmatpush1.msra.mxu0 %v66
    %100 = vmatprep.subr.mxu0 %v69
    %101 = vmatpush1.msra.mxu0 %v68
    %102 = vmatprep.subr.mxu0 %v71
    %103 = vmatpush1.msra.mxu0 %v70
    %104 = vmatprep.subr.mxu0 %v73
    %105 = vmatpush1.msra.mxu0 %v72
    %106 = vmatprep.subr.mxu0 %v75
    %107 = vmatpush1.msra.mxu0 %v74
    %108 = vmatprep.subr.mxu0 %v77
    %109 = vmatpush1.msra.mxu0 %v76
    %110 = vmatprep.subr.mxu0 %v79
    %111 = vmatpush1.msra.mxu0 %v78
    %112 = vmatprep.subr.mxu0 %v81
    %113 = vmatpush1.msra.mxu0 %v80
    %114 = vmatprep.subr.mxu0 %v83
    %115 = vmatpush1.msra.mxu0 %v82
    %116 = vmatprep.subr.mxu0 %v85
    %117 = vmatpush1.msra.mxu0 %v84
    %118 = vmatprep.subr.mxu0 %v87
    %119 = vmatpush1.msra.mxu0 %v86
    %120 = vmatprep.subr.mxu0 %v89
    %121 = vmatpush1.msra.mxu0 %v88
    %122 = vmatprep.subr.mxu0 %v91
    %123 = vmatpush1.msra.mxu0 %v90
    %124 = vmatprep.subr.mxu0 %v93
    %125 = vmatpush1.msra.mxu0 %v92
    %126 = vmatprep.subr.mxu0 %v95
    %127 = vmatpush1.msra.mxu0 %v94
    %128 = vmatprep.subr.mxu0 0.0
    %129 = vmatpush1.msra.mxu0 0.0
    %130 = vmatprep.subr.mxu0 0.0
    %131 = vmatpush1.msra.mxu0 0.0
    %132 = vmatprep.subr.mxu0 0.0
    %133 = vmatpush1.msra.mxu0 0.0
    %134 = vmatprep.subr.mxu0 0.0
    %135 = vmatpush1.msra.mxu0 0.0
    %136 = vmatprep.subr.mxu0 0.0
    %137 = vmatpush1.msra.mxu0 0.0
    %138 = vmatprep.subr.mxu0 0.0
    %139 = vmatpush1.msra.mxu0 0.0
    %140 = vmatprep.subr.mxu0 0.0
    %141 = vmatpush1.msra.mxu0 0.0
    %142 = vmatprep.subr.mxu0 0.0
    %143 = vmatpush1.msra.mxu0 0.0
    %144 = vmatprep.subr.mxu0 0.0
    %145 = vmatpush1.msra.mxu0 0.0
    %146 = vmatprep.subr.mxu0 0.0
    %147 = vmatpush1.msra.mxu0 0.0
    %148 = vmatprep.subr.mxu0 0.0
    %149 = vmatpush1.msra.mxu0 0.0
    %150 = vmatprep.subr.mxu0 0.0
    %151 = vmatpush1.msra.mxu0 0.0
    %152 = vmatprep.subr.mxu0 0.0
    %153 = vmatpush1.msra.mxu0 0.0
    %154 = vmatprep.subr.mxu0 0.0
    %155 = vmatpush1.msra.mxu0 0.0
    %156 = vmatprep.subr.mxu0 0.0
    %157 = vmatpush1.msra.mxu0 0.0
    %158 = vmatprep.subr.mxu0 0.0
    %159 = vmatpush1.msra.mxu0 0.0
    %160 = vmatprep.mubr.f32.mxu0 0.0
    %161 = vmatmul.mubr.f32.gmra.mrb[0].mxu0 %v62
    %v162 = vpop.f32.mrb[0].mxu0
    %v163 = vadd.f32 0.0, %v162
    %v164 = vpop.f32.mrb[0].mxu0
    %v165 = vadd.f32 0.0, %v164
    %166 = vmatprep.mubr.f32.mxu0 0.0
    %167 = vmatmul.mubr.f32.gmra.mrb[0].mxu0 %v63
    %v168 = vpop.f32.mrb[0].mxu0
    %v169 = vadd.f32 0.0, %v168
    %v170 = vpop.f32.mrb[0].mxu0
    %v171 = vadd.f32 0.0, %v170
    %172 = vdwg.mxu0
    %s173 = scalar_lea.vmem [#allocation5], 256
    %v174 = vld [vmem:[%s173] sm:$0xff]
    %v175 = vld [vmem:[%s173 + $0x8] sm:$0xff]
    %v176 = vld [vmem:[%s173 + $0x10] sm:$0xff]
    %v177 = vld [vmem:[%s173 + $0x18] sm:$0xff]
    %v178 = vld [vmem:[%s173 + $0x20] sm:$0xff]
    %v179 = vld [vmem:[%s173 + $0x28] sm:$0xff]
    %v180 = vld [vmem:[%s173 + $0x30] sm:$0xff]
    %v181 = vld [vmem:[%s173 + $0x38] sm:$0xff]
    %v182 = vld [vmem:[%s173 + $0x40] sm:$0xff]
    %v183 = vld [vmem:[%s173 + $0x48] sm:$0xff]
    %v184 = vld [vmem:[%s173 + $0x50] sm:$0xff]
    %v185 = vld [vmem:[%s173 + $0x58] sm:$0xff]
    %v186 = vld [vmem:[%s173 + $0x60] sm:$0xff]
    %v187 = vld [vmem:[%s173 + $0x68] sm:$0xff]
    %v188 = vld [vmem:[%s173 + $0x70] sm:$0xff]
    %v189 = vld [vmem:[%s173 + $0x78] sm:$0xff]
    %v190 = vld [vmem:[%s173 + $0x80] sm:$0xff]
    %v191 = vld [vmem:[%s173 + $0x88] sm:$0xff]
    %v192 = vld [vmem:[%s173 + $0x90] sm:$0xff]
    %v193 = vld [vmem:[%s173 + $0x98] sm:$0xff]
    %v194 = vld [vmem:[%s173 + $0xa0] sm:$0xff]
    %v195 = vld [vmem:[%s173 + $0xa8] sm:$0xff]
    %v196 = vld [vmem:[%s173 + $0xb0] sm:$0xff]
    %v197 = vld [vmem:[%s173 + $0xb8] sm:$0xff]
    %v198 = vld [vmem:[%s173 + $0xc0] sm:$0xff]
    %v199 = vld [vmem:[%s173 + $0xc8] sm:$0xff]
    %v200 = vld [vmem:[%s173 + $0xd0] sm:$0xff]
    %v201 = vld [vmem:[%s173 + $0xd8] sm:$0xff]
    %v202 = vld [vmem:[%s173 + $0xe0] sm:$0xff]
    %v203 = vld [vmem:[%s173 + $0xe8] sm:$0xff]
    %v204 = vld [vmem:[%s173 + $0xf0] sm:$0xff]
    %v205 = vld [vmem:[%s173 + $0xf8] sm:$0xff]
    %206 = vmatprep.subr.mxu0 %v175
    %207 = vmatpush1.msra.mxu0 %v174
    %208 = vmatprep.subr.mxu0 %v177
    %209 = vmatpush1.msra.mxu0 %v176
    %210 = vmatprep.subr.mxu0 %v179
    %211 = vmatpush1.msra.mxu0 %v178
    %212 = vmatprep.subr.mxu0 %v181
    %213 = vmatpush1.msra.mxu0 %v180
    %214 = vmatprep.subr.mxu0 %v183
    %215 = vmatpush1.msra.mxu0 %v182
    %216 = vmatprep.subr.mxu0 %v185
    %217 = vmatpush1.msra.mxu0 %v184
    %218 = vmatprep.subr.mxu0 %v187
    %219 = vmatpush1.msra.mxu0 %v186
    %220 = vmatprep.subr.mxu0 %v189
    %221 = vmatpush1.msra.mxu0 %v188
    %222 = vmatprep.subr.mxu0 %v191
    %223 = vmatpush1.msra.mxu0 %v190
    %224 = vmatprep.subr.mxu0 %v193
    %225 = vmatpush1.msra.mxu0 %v192
    %226 = vmatprep.subr.mxu0 %v195
    %227 = vmatpush1.msra.mxu0 %v194
    %228 = vmatprep.subr.mxu0 %v197
    %229 = vmatpush1.msra.mxu0 %v196
    %230 = vmatprep.subr.mxu0 %v199
    %231 = vmatpush1.msra.mxu0 %v198
    %232 = vmatprep.subr.mxu0 %v201
    %233 = vmatpush1.msra.mxu0 %v200
    %234 = vmatprep.subr.mxu0 %v203
    %235 = vmatpush1.msra.mxu0 %v202
    %236 = vmatprep.subr.mxu0 %v205
    %237 = vmatpush1.msra.mxu0 %v204
    %238 = vmatprep.subr.mxu0 0.0
    %239 = vmatpush1.msra.mxu0 0.0
    %240 = vmatprep.subr.mxu0 0.0
    %241 = vmatpush1.msra.mxu0 0.0
    %242 = vmatprep.subr.mxu0 0.0
    %243 = vmatpush1.msra.mxu0 0.0
    %244 = vmatprep.subr.mxu0 0.0
    %245 = vmatpush1.msra.mxu0 0.0
    %246 = vmatprep.subr.mxu0 0.0
    %247 = vmatpush1.msra.mxu0 0.0
    %248 = vmatprep.subr.mxu0 0.0
    %249 = vmatpush1.msra.mxu0 0.0
    %250 = vmatprep.subr.mxu0 0.0
    %251 = vmatpush1.msra.mxu0 0.0
    %252 = vmatprep.subr.mxu0 0.0
    %253 = vmatpush1.msra.mxu0 0.0
    %254 = vmatprep.subr.mxu0 0.0
    %255 = vmatpush1.msra.mxu0 0.0
    %256 = vmatprep.subr.mxu0 0.0
    %257 = vmatpush1.msra.mxu0 0.0
    %258 = vmatprep.subr.mxu0 0.0
    %259 = vmatpush1.msra.mxu0 0.0
    %260 = vmatprep.subr.mxu0 0.0
    %261 = vmatpush1.msra.mxu0 0.0
    %262 = vmatprep.subr.mxu0 0.0
    %263 = vmatpush1.msra.mxu0 0.0
    %264 = vmatprep.subr.mxu0 0.0
    %265 = vmatpush1.msra.mxu0 0.0
    %266 = vmatprep.subr.mxu0 0.0
    %267 = vmatpush1.msra.mxu0 0.0
    %268 = vmatprep.subr.mxu0 0.0
    %269 = vmatpush1.msra.mxu0 0.0
    %270 = vmatprep.mubr.f32.mxu0 0.0
    %271 = vmatmul.mubr.f32.gmra.mrb[0].mxu0 %v62
    %v272 = vpop.f32.mrb[0].mxu0
    %v273 = vadd.f32 0.0, %v272
    %v274 = vpop.f32.mrb[0].mxu0
    %v275 = vadd.f32 0.0, %v274
    %276 = vmatprep.mubr.f32.mxu0 0.0
    %277 = vmatmul.mubr.f32.gmra.mrb[0].mxu0 %v63
    %v278 = vpop.f32.mrb[0].mxu0
    %v279 = vadd.f32 0.0, %v278
    %v280 = vpop.f32.mrb[0].mxu0
    %v281 = vadd.f32 0.0, %v280
    %282 = vdwg.mxu0
    %v283 = vxor.u32 %v163, 2147483648
    %v284 = vxor.u32 %v165, 2147483648
    %v285 = vxor.u32 %v169, 2147483648
    %v286 = vxor.u32 %v171, 2147483648
    %v287 = vmul.f32 %v283, 1.442695
    %v288 = vpow.pop %v287
    %v289 = vmul.f32 %v284, 1.442695
    %v290 = vpow.pop %v289
    %v291 = vmul.f32 %v285, 1.442695
    %v292 = vpow.pop %v291
    %v293 = vmul.f32 %v286, 1.442695
    %v294 = vpow.pop %v293
    %v295 = vadd.f32 %v288, 1.0
    %v296 = vadd.f32 %v290, 1.0
    %v297 = vadd.f32 %v292, 1.0
    %v298 = vadd.f32 %v294, 1.0
    %v299 = vrcp.pop %v295
    %v300 = vmul.f32 1.0, %v299
    %v301 = vrcp.pop %v296
    %v302 = vmul.f32 1.0, %v301
    %v303 = vrcp.pop %v297
    %v304 = vmul.f32 1.0, %v303
    %v305 = vrcp.pop %v298
    %v306 = vmul.f32 1.0, %v305
    %v307 = vmul.f32 %v163, %v300
    %v308 = vmul.f32 %v165, %v302
    %v309 = vmul.f32 %v169, %v304
    %v310 = vmul.f32 %v171, %v306
    %v311 = vmul.f32 %v307, %v273
    %v312 = vmul.f32 %v308, %v275
    %v313 = vmul.f32 %v309, %v279
    %v314 = vmul.f32 %v310, %v281
    %v315 = vld [vmem:[#allocation8] sm:$0xff]
    %v316 = vld [vmem:[#allocation8 + $0x8] sm:$0xff]
    %v317 = vld [vmem:[#allocation7] sm:$0xff]
    %v318 = vld [vmem:[#allocation7 + $0x8] sm:$0xff]
    %v319 = vld [vmem:[#allocation7 + $0x10] sm:$0xff]
    %v320 = vld [vmem:[#allocation7 + $0x18] sm:$0xff]
    %v321 = vld [vmem:[#allocation7 + $0x20] sm:$0xff]
    %v322 = vld [vmem:[#allocation7 + $0x28] sm:$0xff]
    %v323 = vld [vmem:[#allocation7 + $0x30] sm:$0xff]
    %v324 = vld [vmem:[#allocation7 + $0x38] sm:$0xff]
    %v325 = vld [vmem:[#allocation7 + $0x40] sm:$0xff]
    %v326 = vld [vmem:[#allocation7 + $0x48] sm:$0xff]
    %v327 = vld [vmem:[#allocation7 + $0x50] sm:$0xff]
    %v328 = vld [vmem:[#allocation7 + $0x58] sm:$0xff]
    %v329 = vld [vmem:[#allocation7 + $0x60] sm:$0xff]
    %v330 = vld [vmem:[#allocation7 + $0x68] sm:$0xff]
    %v331 = vld [vmem:[#allocation7 + $0x70] sm:$0xff]
    %v332 = vld [vmem:[#allocation7 + $0x78] sm:$0xff]
    %v333 = vld [vmem:[#allocation7 + $0x80] sm:$0xff]
    %v334 = vld [vmem:[#allocation7 + $0x88] sm:$0xff]
    %v335 = vld [vmem:[#allocation7 + $0x90] sm:$0xff]
    %v336 = vld [vmem:[#allocation7 + $0x98] sm:$0xff]
    %v337 = vld [vmem:[#allocation7 + $0xa0] sm:$0xff]
    %v338 = vld [vmem:[#allocation7 + $0xa8] sm:$0xff]
    %v339 = vld [vmem:[#allocation7 + $0xb0] sm:$0xff]
    %v340 = vld [vmem:[#allocation7 + $0xb8] sm:$0xff]
    %v341 = vld [vmem:[#allocation7 + $0xc0] sm:$0xff]
    %v342 = vld [vmem:[#allocation7 + $0xc8] sm:$0xff]
    %v343 = vld [vmem:[#allocation7 + $0xd0] sm:$0xff]
    %v344 = vld [vmem:[#allocation7 + $0xd8] sm:$0xff]
    %v345 = vld [vmem:[#allocation7 + $0xe0] sm:$0xff]
    %v346 = vld [vmem:[#allocation7 + $0xe8] sm:$0xff]
    %v347 = vld [vmem:[#allocation7 + $0xf0] sm:$0xff]
    %v348 = vld [vmem:[#allocation7 + $0xf8] sm:$0xff]
    %349 = vmatprep.subr.mxu0 0.0
    %350 = vmatpush1.msra.mxu0 %v317
    %351 = vmatprep.subr.mxu0 0.0
    %352 = vmatpush1.msra.mxu0 %v318
    %353 = vmatprep.subr.mxu0 0.0
    %354 = vmatpush1.msra.mxu0 %v319
    %355 = vmatprep.subr.mxu0 0.0
    %356 = vmatpush1.msra.mxu0 %v320
    %357 = vmatprep.subr.mxu0 0.0
    %358 = vmatpush1.msra.mxu0 %v321
    %359 = vmatprep.subr.mxu0 0.0
    %360 = vmatpush1.msra.mxu0 %v322
    %361 = vmatprep.subr.mxu0 0.0
    %362 = vmatpush1.msra.mxu0 %v323
    %363 = vmatprep.subr.mxu0 0.0
    %364 = vmatpush1.msra.mxu0 %v324
    %365 = vmatprep.subr.mxu0 0.0
    %366 = vmatpush1.msra.mxu0 %v325
    %367 = vmatprep.subr.mxu0 0.0
    %368 = vmatpush1.msra.mxu0 %v326
    %369 = vmatprep.subr.mxu0 0.0
    %370 = vmatpush1.msra.mxu0 %v327
    %371 = vmatprep.subr.mxu0 0.0
    %372 = vmatpush1.msra.mxu0 %v328
    %373 = vmatprep.subr.mxu0 0.0
    %374 = vmatpush1.msra.mxu0 %v329
    %375 = vmatprep.subr.mxu0 0.0
    %376 = vmatpush1.msra.mxu0 %v330
    %377 = vmatprep.subr.mxu0 0.0
    %378 = vmatpush1.msra.mxu0 %v331
    %379 = vmatprep.subr.mxu0 0.0
    %380 = vmatpush1.msra.mxu0 %v332
    %381 = vmatprep.subr.mxu0 0.0
    %382 = vmatpush1.msra.mxu0 %v333
    %383 = vmatprep.subr.mxu0 0.0
    %384 = vmatpush1.msra.mxu0 %v334
    %385 = vmatprep.subr.mxu0 0.0
    %386 = vmatpush1.msra.mxu0 %v335
    %387 = vmatprep.subr.mxu0 0.0
    %388 = vmatpush1.msra.mxu0 %v336
    %389 = vmatprep.subr.mxu0 0.0
    %390 = vmatpush1.msra.mxu0 %v337
    %391 = vmatprep.subr.mxu0 0.0
    %392 = vmatpush1.msra.mxu0 %v338
    %393 = vmatprep.subr.mxu0 0.0
    %394 = vmatpush1.msra.mxu0 %v339
    %395 = vmatprep.subr.mxu0 0.0
    %396 = vmatpush1.msra.mxu0 %v340
    %397 = vmatprep.subr.mxu0 0.0
    %398 = vmatpush1.msra.mxu0 %v341
    %399 = vmatprep.subr.mxu0 0.0
    %400 = vmatpush1.msra.mxu0 %v342
    %401 = vmatprep.subr.mxu0 0.0
    %402 = vmatpush1.msra.mxu0 %v343
    %403 = vmatprep.subr.mxu0 0.0
    %404 = vmatpush1.msra.mxu0 %v344
    %405 = vmatprep.subr.mxu0 0.0
    %406 = vmatpush1.msra.mxu0 %v345
    %407 = vmatprep.subr.mxu0 0.0
    %408 = vmatpush1.msra.mxu0 %v346
    %409 = vmatprep.subr.mxu0 0.0
    %410 = vmatpush1.msra.mxu0 %v347
    %411 = vmatprep.subr.mxu0 0.0
    %412 = vmatpush1.msra.mxu0 %v348
    %413 = vmatprep.mubr.f32.mxu0 %v312
    %414 = vmatmul.mubr.f32.gmra.mrb[0].mxu0 %v311
    %v415 = vpop.f32.mrb[0].mxu0
    %v416 = vadd.f32 0.0, %v415
    %v417 = vpop.f32.mrb[0].mxu0
    %418 = vmatprep.mubr.f32.mxu0 %v314
    %419 = vmatmul.mubr.f32.gmra.mrb[0].mxu0 %v313
    %v420 = vpop.f32.mrb[0].mxu0
    %v421 = vadd.f32 0.0, %v420
    %v422 = vpop.f32.mrb[0].mxu0
    %423 = vdwg.mxu0
    %v424 = vadd.f32 %v315, %v416
    %v425 = vadd.f32 %v316, %v421
    %426 = vst [vmem:[#allocation8] sm:$0xff] %v424
    %427 = vst [vmem:[#allocation8 + $0x8] sm:$0xff] %v425
    // Predicated region
    $region30: #{tpu_custom_call.1} parent=1 // pred_check
      _
    $region31: #{tpu_custom_call.1} parent=1 // pred_check_branch
      %429 = sbr.rel (0) target = $region33
    $region32: #{tpu_custom_call.1} parent=1 // pred_region
      %s431 = ssub.s32 256, 256
      %432 = vsyncadd [#allocation4], %s431
      %s433 = sshll.u32 [#allocation8], 4
      %s434 = int_to_ptr.vmem [resolvable:$true] %s433
      %439 = dma.vmem_to_hbm [thread:$0]  %s434, 256, %s3, [#allocation4], 128, 128, 8
    $region33: #{tpu_custom_call.1} parent=1 // pred_fallthru
      _
    // Predicated region
    $region34: #{tpu_custom_call.1} parent=1 // pred_check
      _
    $region35: #{tpu_custom_call.1} parent=1 // pred_check_branch
      %441 = sbr.rel (0) target = $region37
    $region36: #{tpu_custom_call.1} parent=1 // pred_region
      %442 = dma.done [#allocation4], 256
    $region37: #{tpu_custom_call.1} parent=1 // pred_fallthru
      _
    %443 = vsyncpa [#allocation3], 1
    %444 = vsyncpa [#allocation6], 1
    %445 = vsyncpa [#allocation4], 1

</llo_original>
